<compile_context>
chip_gen: v5e
topology: v5e:2x2
jax: 0.10.0
libtpu: 0.0.40
codegen_flags: <defaults>
</compile_context>

<pallas_src>
import jax
import jax.numpy as jnp
from jax.experimental import pallas as pl
from jax.experimental.pallas import tpu as pltpu


# ----------------------------- Pallas kernel -------------------------------

def _fusion_kernel(x_ref, y_ref, o_ref):
    x = x_ref[...]
    y = y_ref[...]
    d = x - y
    s = x + y
    o_ref[...] = jnp.maximum(s, 0) - d * d


# ------------------------------- wrapper ------------------------------------

_SMALL_PATH_BYTES = 512 * 1024        # per-array: below this, one block, no grid
_BASE_TILE_BYTES = 2 * 1024 * 1024    # v5e / v6e per-array tile target
_V7X_TILE_BYTES = 4 * 1024 * 1024     # v7x per-array tile cap
_LANE_CANDIDATES = (512, 256, 128)    # widest lane-dense width that divides n


def _min_sublanes(dtype) -> int:
    """Minimum sublane count for packed dtypes: 8 f32, 16 bf16, 32 int8/fp8."""
    itemsize = jnp.dtype(dtype).itemsize
    return max(8, 32 // max(itemsize, 1))


def _is_v7x() -> bool:
    try:
        kind = jax.devices()[0].device_kind.lower()
    except Exception:
        return False
    return ("v7" in kind) or ("7x" in kind)


def fusion_forward(x, y):
    """Computes -(x - y)**2 + relu(x + y) with a Pallas TPU kernel."""
    assert x.shape == y.shape, "x and y must have the same shape"
    assert x.dtype == y.dtype, "x and y must have the same dtype"
    orig_shape = x.shape
    dtype = x.dtype
    itemsize = jnp.dtype(dtype).itemsize
    n = x.size
    min_sub = _min_sublanes(dtype)
    total_bytes = n * itemsize

    xf = jnp.ravel(x)
    yf = jnp.ravel(y)

    if total_bytes <= _SMALL_PATH_BYTES:
        # ---- small path: single block, no grid (no pipeline overhead) ----
        lanes = 128
        chunk = min_sub * lanes
        n_pad = -(-n // chunk) * chunk
        if n_pad != n:
            xf = jnp.pad(xf, (0, n_pad - n))
            yf = jnp.pad(yf, (0, n_pad - n))
        rows = n_pad // lanes
        out2 = pl.pallas_call(
            _fusion_kernel,
            out_shape=jax.ShapeDtypeStruct((rows, lanes), dtype),
        )(xf.reshape(rows, lanes), yf.reshape(rows, lanes))
    else:
        # ---- tiled path: lane-dense tiles, pipelined over a cdiv grid ----
        lanes = next((c for c in _LANE_CANDIDATES if n % c == 0),
                     _LANE_CANDIDATES[0])
        n_pad = -(-n // lanes) * lanes
        if n_pad != n:  # rare: only pads to lane granularity (<= 511 elems)
            xf = jnp.pad(xf, (0, n_pad - n))
            yf = jnp.pad(yf, (0, n_pad - n))
        rows = n_pad // lanes
        x2 = xf.reshape(rows, lanes)
        y2 = yf.reshape(rows, lanes)

        is_v7x = _is_v7x()
        min_steps = 8 if is_v7x else 4
        tile_cap = _V7X_TILE_BYTES if is_v7x else _BASE_TILE_BYTES
        min_block_bytes = min_sub * lanes * itemsize
        tile_bytes = min(tile_cap, max(total_bytes // min_steps, min_block_bytes))

        block_rows = (tile_bytes // (itemsize * lanes)) // min_sub * min_sub
        block_rows = max(min_sub, block_rows)
        block_rows = min(block_rows, max(min_sub, (rows // min_sub) * min_sub))

        grid = (pl.cdiv(rows, block_rows),)   # ragged last block is masked
        spec = pl.BlockSpec((block_rows, lanes), lambda i: (i, 0))

        out2 = pl.pallas_call(
            _fusion_kernel,
            out_shape=jax.ShapeDtypeStruct((rows, lanes), dtype),
            grid=grid,
            in_specs=[spec, spec],
            out_specs=spec,
            compiler_params=pltpu.CompilerParams(
                dimension_semantics=("parallel",),
                vmem_limit_bytes=32 * 1024 * 1024,
            ),
        )(x2, y2)

    if n_pad != n:
        return out2.reshape(-1)[:n].reshape(orig_shape)
    return out2.reshape(orig_shape)


# --------------------------------- main -------------------------------------

if __name__ == "__main__":
    key = jax.random.PRNGKey(0)
    kx, ky, kf, kx2, ky2, kx3, ky3 = jax.random.split(key, 7)

    def ref_fn(a, b):
        return -(a - b) ** 2 + jnp.maximum(a + b, 0.0)

    # Small NCHW inputs (single-block path).
    x = jax.random.normal(kx, (2, 4, 16, 16), jnp.float32)
    y = jax.random.normal(ky, (2, 4, 16, 16), jnp.float32)
    feature = jax.random.normal(kf, (2, 32), jnp.float32)  # unused, as in torch

    out = jax.block_until_ready(fusion_forward(x, y))
    assert out.shape == x.shape
    assert jnp.allclose(out, ref_fn(x, y), atol=1e-6, rtol=1e-6)

    # Larger input (tiled, pipelined path; divisible -> no pad, no slice).
    xb = jax.random.normal(kx2, (8, 64, 64, 64), jnp.float32)
    yb = jax.random.normal(ky2, (8, 64, 64, 64), jnp.float32)
    outb = jax.block_until_ready(fusion_forward(xb, yb))
    assert outb.shape == xb.shape
    assert jnp.allclose(outb, ref_fn(xb, yb), atol=1e-6, rtol=1e-6)

    # Ragged size (tiled path, cdiv grid with masked last block).
    xr = jax.random.normal(kx3, (1, 1, 700, 300), jnp.float32)
    yr = jax.random.normal(ky3, (1, 1, 700, 300), jnp.float32)
    outr = jax.block_until_ready(fusion_forward(xr, yr))
    assert outr.shape == xr.shape
    assert jnp.allclose(outr, ref_fn(xr, yr), atol=1e-6, rtol=1e-6)

    print("KERNEL_OK")
</pallas_src>

<mosaic_0001>
module attributes {stable_mosaic.version = 11 : i64} {
  func.func @_fusion_kernel(%arg0: memref<16x128xf32, #tpu.memory_space<vmem>>, %arg1: memref<16x128xf32, #tpu.memory_space<vmem>>, %arg2: memref<16x128xf32, #tpu.memory_space<vmem>>) attributes {dimension_semantics = [], scalar_prefetch = 0 : i64, scratch_operands = 0 : i64, tpu.core_type = #tpu.core_type<tc>} {
    %c0 = arith.constant 0 : index
    %c0_0 = arith.constant 0 : index
    %0 = vector.load %arg0[%c0, %c0_0] : memref<16x128xf32, #tpu.memory_space<vmem>>, vector<16x128xf32>
    %c0_1 = arith.constant 0 : index
    %c0_2 = arith.constant 0 : index
    %1 = vector.load %arg1[%c0_1, %c0_2] : memref<16x128xf32, #tpu.memory_space<vmem>>, vector<16x128xf32>
    %2 = arith.subf %0, %1 : vector<16x128xf32>
    %3 = arith.addf %0, %1 : vector<16x128xf32>
    %cst = arith.constant 0.000000e+00 : f32
    %4 = vector.broadcast %cst : f32 to vector<16x128xf32>
    %5 = arith.maximumf %3, %4 : vector<16x128xf32>
    %6 = arith.mulf %2, %2 : vector<16x128xf32>
    %7 = arith.subf %5, %6 : vector<16x128xf32>
    %c0_3 = arith.constant 0 : index
    %c0_4 = arith.constant 0 : index
    %8 = vector.load %arg2[%c0_3, %c0_4] : memref<16x128xf32, #tpu.memory_space<vmem>>, vector<16x128xf32>
    tpu.vector_store %arg2[%c0_3, %c0_4], %7 {strides = array<i32>} : memref<16x128xf32, #tpu.memory_space<vmem>>, vector<16x128xf32>,
    return
  }
}

</mosaic_0001>

<llo_original>
// kernel: tpu_custom_call.1
$region0: #{tpu_custom_call.1}
  #allocation0 [shape = 'u32[]', space=smem, size = 0x4, offset = 0x4, fixed_abs, tag = 'smem constant byte address 0x4 - core index']
  #allocation1 [shape = 'u32[72,128]{1,0:T(1,128)}', space=vmem, size = 0x9000, scoped, tag = 'internal scratch']
  %s0 = inlined_call_operand.hbm [shape: f32[16,128], index: 0, kind: input, shape index: {}]
  %s1 = inlined_call_operand.hbm [shape: f32[16,128], index: 1, kind: input, shape index: {}]
  %s2 = inlined_call_operand.hbm [shape: f32[16,128], index: 2, kind: output, shape index: {}]
  %s3 = sld [smem:[#allocation0]]
  $region26: #{tpu_custom_call.1} parent=0
    _
  %s5 = ssub.s32 1, %s3
  %s6 = scalar_select 0, %s5, %s3
  $region1: #{tpu_custom_call.1} parent=0
    #allocation2 [shape = 'u8[8192]{0}', space=vmem, size = 0x2000, scoped, tag = 'input window, operand 0, single buffered']
    #allocation3 [shape = 's32[1]{0}', space=sflag, size = 0x4, scoped, tag = 'scoped memory for tpu_custom_call.1']
    #allocation4 [shape = 's32[1]{0}', space=sflag, size = 0x4, scoped, tag = 'scoped memory for tpu_custom_call.1']
    #allocation5 [shape = 'u8[8192]{0}', space=vmem, size = 0x2000, scoped, tag = 'input window, operand 1, single buffered']
    #allocation6 [shape = 's32[1]{0}', space=sflag, size = 0x4, scoped, tag = 'scoped memory for tpu_custom_call.1']
    #allocation7 [shape = 'u8[8192]{0}', space=vmem, size = 0x2000, scoped, tag = 'output window, operand 0, single buffered']
    %7 = vsyncpa [#allocation3], 0
    %8 = vsyncpa [#allocation6], 0
    %9 = vsyncpa [#allocation4], 0
    // Predicated region
    $region2: #{tpu_custom_call.1} parent=1 // pred_check
      _
    $region3: #{tpu_custom_call.1} parent=1 // pred_check_branch
      %11 = sbr.rel (0) target = $region5
    $region4: #{tpu_custom_call.1} parent=1 // pred_region
      %13 = vsyncadd [#allocation3], 0
      %s14 = sshll.u32 %s0, 4
      %s15 = int_to_ptr.hbm [resolvable:$true] %s14
      %s16 = sshll.u32 [#allocation2], 4
      %s17 = int_to_ptr.vmem [resolvable:$true] %s16
      %22 = dma.hbm_to_vmem [thread:$0]  %s15, 256, %s17, [#allocation3], 128, 128, 8
    $region5: #{tpu_custom_call.1} parent=1 // pred_fallthru
      _
    // Predicated region
    $region6: #{tpu_custom_call.1} parent=1 // pred_check
      _
    $region7: #{tpu_custom_call.1} parent=1 // pred_check_branch
      %24 = sbr.rel (0) target = $region9
    $region8: #{tpu_custom_call.1} parent=1 // pred_region
      %26 = vsyncadd [#allocation6], 0
      %s27 = sshll.u32 %s1, 4
      %s28 = int_to_ptr.hbm [resolvable:$true] %s27
      %s29 = sshll.u32 [#allocation5], 4
      %s30 = int_to_ptr.vmem [resolvable:$true] %s29
      %35 = dma.hbm_to_vmem [thread:$0]  %s28, 256, %s30, [#allocation6], 128, 128, 8
    $region9: #{tpu_custom_call.1} parent=1 // pred_fallthru
      _
    // Predicated region
    $region10: #{tpu_custom_call.1} parent=1 // pred_check
      _
    $region11: #{tpu_custom_call.1} parent=1 // pred_check_branch
      %37 = sbr.rel (0) target = $region13
    $region12: #{tpu_custom_call.1} parent=1 // pred_region
      %39 = dma.done [#allocation3], 256
    $region13: #{tpu_custom_call.1} parent=1 // pred_fallthru
      _
    // Predicated region
    $region14: #{tpu_custom_call.1} parent=1 // pred_check
      _
    $region15: #{tpu_custom_call.1} parent=1 // pred_check_branch
      %41 = sbr.rel (0) target = $region17
    $region16: #{tpu_custom_call.1} parent=1 // pred_region
      %43 = dma.done [#allocation6], 256
    $region17: #{tpu_custom_call.1} parent=1 // pred_fallthru
      _
    %v44 = vld [vmem:[#allocation2] sm:$0xff]
    %v45 = vld [vmem:[#allocation2 + $0x8] sm:$0xff]
    %v46 = vld [vmem:[#allocation5] sm:$0xff]
    %v47 = vld [vmem:[#allocation5 + $0x8] sm:$0xff]
    %v48 = vsub.f32 %v44, %v46
    %v49 = vsub.f32 %v45, %v47
    %v50 = vadd.f32 %v44, %v46
    %v51 = vadd.f32 %v45, %v47
    %v52 = vmax.f32 %v50, 0.0
    %v53 = vmax.f32 %v51, 0.0
    %v54 = vmul.f32 %v48, %v48
    %v55 = vmul.f32 %v49, %v49
    %v56 = vsub.f32 %v52, %v54
    %v57 = vsub.f32 %v53, %v55
    %58 = vst [vmem:[#allocation7] sm:$0xff] %v56
    %59 = vst [vmem:[#allocation7 + $0x8] sm:$0xff] %v57
    // Predicated region
    $region18: #{tpu_custom_call.1} parent=1 // pred_check
      _
    $region19: #{tpu_custom_call.1} parent=1 // pred_check_branch
      %61 = sbr.rel (0) target = $region21
    $region20: #{tpu_custom_call.1} parent=1 // pred_region
      %63 = vsyncadd [#allocation4], 0
      %s64 = sshll.u32 [#allocation7], 4
      %s65 = int_to_ptr.vmem [resolvable:$true] %s64
      %s66 = sshll.u32 %s2, 4
      %s67 = int_to_ptr.hbm [resolvable:$true] %s66
      %72 = dma.vmem_to_hbm [thread:$0]  %s65, 256, %s67, [#allocation4], 128, 128, 8
    $region21: #{tpu_custom_call.1} parent=1 // pred_fallthru
      _
    // Predicated region
    $region22: #{tpu_custom_call.1} parent=1 // pred_check
      _
    $region23: #{tpu_custom_call.1} parent=1 // pred_check_branch
      %74 = sbr.rel (0) target = $region25
    $region24: #{tpu_custom_call.1} parent=1 // pred_region
      %76 = dma.done [#allocation4], 256
    $region25: #{tpu_custom_call.1} parent=1 // pred_fallthru
      _
    %77 = vsyncpa [#allocation3], 1
    %78 = vsyncpa [#allocation6], 1
    %79 = vsyncpa [#allocation4], 1

</llo_original>
